<compile_context>
chip_gen: v7x
topology: tpu7x:2x2x1
jax: 0.10.0
libtpu: 0.0.40
codegen_flags: <defaults>
</compile_context>

<pallas_src>
import functools

import jax
import jax.numpy as jnp
from jax.experimental import pallas as pl
from jax.experimental.pallas import tpu as pltpu


def _cnn1d_kernel(x_ref, wc_ref, bc_ref, w1_ref, b1_ref, w2_ref, b2_ref,
                  out_ref, *, TB, Lpool, K, C, F):
    """conv(x2 strands)+ReLU+MaxPool -> flatten -> dnn -> ReLU -> out -> sigmoid."""
    F2 = 2 * F
    KC2 = K * 2 * C

    # Input tile: (TB, Lpool+1, K*2C) bf16 -- groups of K padded, channels-last
    # input positions.  Window w spans groups w and w+1 (2K positions).
    z = x_ref[...]
    za = z[:, :Lpool, :].reshape(TB * Lpool, KC2)   # taps 0..K-1 of each window
    zb = z[:, 1:, :].reshape(TB * Lpool, KC2)       # taps K..2K-1 of each window

    # Both strands' convolutions for a whole pool window: two accumulated
    # banded matmuls on the MXU, N = K*2F = 256 lanes, f32 accumulation.
    y = jnp.dot(za, wc_ref[0], preferred_element_type=jnp.float32)
    y = y + jnp.dot(zb, wc_ref[1], preferred_element_type=jnp.float32)  # (TB*Lpool, K*2F)

    # MaxPool1d(K, K): elementwise max over the K 2F-wide lane groups (VPU).
    pooled = y[:, :F2]
    for p in range(1, K):
        pooled = jnp.maximum(pooled, y[:, p * F2:(p + 1) * F2])
    # relu(max(conv) + bias) == maxpool(relu(conv + bias)): bias is per-filter.
    pooled = jnp.maximum(pooled + bc_ref[...], 0.0)                     # (TB*Lpool, 2F)

    # Flatten (torch's concat(dim=2) -> Flatten ordering is absorbed into the
    # w1 row permutation done in the wrapper): lane-concat pooled positions.
    # TODO(synk): replace with pooled.reshape(TB, Lpool*2F) once Mosaic's
    # sublane->lane merging reshape is guaranteed to lower.
    pooled = pooled.reshape(TB, Lpool, F2)
    slab = jnp.concatenate([pooled[:, p, :] for p in range(Lpool)], axis=-1)

    # dnn + ReLU: one matmul, contraction = Lpool*2F.
    h1 = jnp.dot(slab.astype(w1_ref.dtype), w1_ref[...],
                 preferred_element_type=jnp.float32) + b1_ref[...]
    h1 = jnp.maximum(h1, 0.0)

    # Dropout(p=0.33): identity at inference time.

    # Output layer (out_features=1): VPU multiply + lane reduction, sigmoid.
    head = jnp.sum(h1 * w2_ref[...], axis=-1, keepdims=True) + b2_ref[...]
    # TODO(synk): emit a lane-dense (1, TB) block once a (TB,1)->(1,TB)
    # relayout is guaranteed to lower; the (TB, 1) writeback is negligible.
    out_ref[...] = jax.nn.sigmoid(head)


def _round_up(v, m):
    return ((v + m - 1) // m) * m


def _vmem_budget_bytes():
    """(working-set budget, vmem_limit_bytes) for the current TPU generation."""
    kind = ""
    try:
        kind = jax.devices()[0].device_kind.lower()
    except Exception:
        pass
    if "v2" in kind or "v3" in kind:
        return 10 * (1 << 20), 16 * (1 << 20)
    if any(t in kind for t in ("v4", "v5", "v6")):
        # 128 MiB physical VMEM: big batch tiles amortize per-step overhead.
        return 72 * (1 << 20), 100 * (1 << 20)
    # v7x (64 MiB VMEM) or unknown: stay conservative.
    return 34 * (1 << 20), 48 * (1 << 20)


def _plan_batch_tiles(B, Lpool, K, C, F, Dnn, budget_bytes):
    """Pick (batch tile, padded batch) from a lane-padding-aware VMEM model."""
    lane = lambda n: _round_up(n, 128)
    per_row = (
        3 * (Lpool + 1) * lane(K * 2 * C) * 2      # bf16 input tile (2 bufs) + slices
        + Lpool * lane(K * 2 * F) * 4              # conv output, f32
        + Lpool * lane(2 * F) * 4                  # pooled, f32
        + lane(Lpool * 2 * F) * (4 + 2)            # flattened slab f32 + bf16
        + 2 * lane(Dnn) * 4                        # dnn activations, f32
    )
    fixed = (
        2 * 2 * _round_up(K * 2 * C, 8) * lane(K * 2 * F) * 2   # banded conv weight
        + 2 * _round_up(Lpool * 2 * F, 8) * lane(Dnn) * 2       # dnn weight
        + 2 * (1 << 20)                                         # biases + slack
    )
    cap = max(8, (budget_bytes - fixed) // per_row)
    tb_max = int(min(2048, cap))
    if B <= tb_max and B <= 128:
        return B, B                                 # tiny batch: one full tile
    target = max(8, -(-B // 2))                     # prefer >=2 steps (megacore)
    tb = 8
    while tb * 2 <= min(tb_max, target):
        tb *= 2
    b_pad = -(-B // tb) * tb
    return tb, b_pad


def cnn1d_classifier_forward(x, params, *, seq_len, in_channels=4,
                             kernel_size=4, num_filters=32, dnn_size=128):
    """x: (2, B, C, L) float32 (forward/backward strand, batch, channels, length).
    Returns (B, 1) float32 probabilities, matching Cnn1dClassifier.forward."""
    B = x.shape[1]
    C, L, K, F, Dnn = in_channels, seq_len, kernel_size, num_filters, dnn_size
    # PyTorch MaxPool1d(K, K) silently drops a ragged tail; we require none.
    assert L % K == 0, "seq_len must be a multiple of kernel_size"
    Lpool = L // K

    # -------- glue (plain JAX, bf16, nothing im2col-expanded is materialized) --------
    # Conv1d(padding='same'), even K: left = (K-1)//2, right = K-1-left, plus one
    # spare zero so the padded length is a whole number of K-groups (zero weight).
    pad_l = (K - 1) // 2
    pad_r = K - 1 - pad_l
    x_bf = x.astype(jnp.bfloat16)
    x_cl = jnp.transpose(jnp.concatenate([x_bf[0], x_bf[1]], axis=1), (0, 2, 1))  # (B, L, 2C)
    x_pd = jnp.pad(x_cl, ((0, 0), (pad_l, pad_r + 1), (0, 0)))                    # (B, L+K, 2C)
    x_in = x_pd.reshape(B, Lpool + 1, K * 2 * C)        # free (metadata) reshape in HBM

    # Banded conv weight: rows j*2C+c (j = position inside the 2K-wide input
    # window), cols p*2F+o (p = output position inside the pool window,
    # o<F forward filters, o>=F backward).  PyTorch conv weight is (F, C, K).
    wc_tap = jnp.zeros((K, 2 * C, 2 * F), jnp.float32)
    wc_tap = wc_tap.at[:, :C, :F].set(jnp.transpose(params['conv_f_w'], (2, 1, 0)))
    wc_tap = wc_tap.at[:, C:, F:].set(jnp.transpose(params['conv_b_w'], (2, 1, 0)))
    w_band = jnp.zeros((2 * K, 2 * C, K, 2 * F), jnp.float32)
    for p in range(K):
        w_band = w_band.at[p:p + K, :, p, :].set(wc_tap)
    w_band = w_band.reshape(2 * K * 2 * C, K * 2 * F)
    wc = jnp.stack([w_band[:K * 2 * C], w_band[K * 2 * C:]], axis=0).astype(jnp.bfloat16)
    bc = jnp.concatenate([params['conv_f_b'], params['conv_b_b']]).reshape(1, 2 * F)

    # dnn weight: PyTorch Flatten of concat(hf, hb, dim=2) indexes inputs as
    # f*(2*Lpool) + branch*Lpool + p; the kernel's slab index is
    # p*(2F) + branch*F + f, so permute the dnn weight rows accordingly.
    w1 = params['dnn_w'].T.reshape(F, 2, Lpool, Dnn)
    w1 = jnp.transpose(w1, (2, 1, 0, 3)).reshape(Lpool * 2 * F, Dnn).astype(jnp.bfloat16)
    b1 = params['dnn_b'].reshape(1, Dnn)
    w2 = params['out_w'].reshape(1, Dnn)
    b2 = params['out_b'].reshape(1, 1)

    budget, vmem_limit = _vmem_budget_bytes()
    TB, Bpad = _plan_batch_tiles(B, Lpool, K, C, F, Dnn, budget)
    if Bpad > B:
        x_in = jnp.pad(x_in, ((0, Bpad - B), (0, 0), (0, 0)))

    kernel = functools.partial(_cnn1d_kernel, TB=TB, Lpool=Lpool, K=K, C=C, F=F)

    out = pl.pallas_call(
        kernel,
        out_shape=jax.ShapeDtypeStruct((Bpad, 1), jnp.float32),
        grid=(Bpad // TB,),
        in_specs=[
            pl.BlockSpec((TB, Lpool + 1, K * 2 * C), lambda i: (i, 0, 0)),
            pl.BlockSpec(wc.shape, lambda i: (0, 0, 0)),
            pl.BlockSpec(bc.shape, lambda i: (0, 0)),
            pl.BlockSpec(w1.shape, lambda i: (0, 0)),
            pl.BlockSpec(b1.shape, lambda i: (0, 0)),
            pl.BlockSpec(w2.shape, lambda i: (0, 0)),
            pl.BlockSpec(b2.shape, lambda i: (0, 0)),
        ],
        out_specs=pl.BlockSpec((TB, 1), lambda i: (i, 0)),
        compiler_params=pltpu.CompilerParams(
            dimension_semantics=("parallel",),
            vmem_limit_bytes=vmem_limit),
    )(x_in, wc, bc, w1, b1, w2, b2)
    return out[:B] if Bpad > B else out


def _reference_forward(x, params, *, seq_len, in_channels=4, kernel_size=4,
                       num_filters=32, dnn_size=128):
    """Pure-JAX f32 reference mirroring the PyTorch module."""
    C, L, K, F = in_channels, seq_len, kernel_size, num_filters
    pad_l = (K - 1) // 2
    pad_r = K - 1 - pad_l
    Lp = L // K

    def branch(xi, w, b):
        xp = jnp.pad(xi, ((0, 0), (0, 0), (pad_l, pad_r)))
        y = b[None, :, None] + sum(
            jnp.einsum('bcl,fc->bfl', xp[:, :, k:k + L], w[:, :, k]) for k in range(K))
        y = jax.nn.relu(y)
        return y[:, :, :Lp * K].reshape(y.shape[0], F, Lp, K).max(axis=-1)

    hf = branch(x[0], params['conv_f_w'], params['conv_f_b'])
    hb = branch(x[1], params['conv_b_w'], params['conv_b_b'])
    h = jnp.concatenate([hf, hb], axis=2).reshape(x.shape[1], -1)
    h = jax.nn.relu(h @ params['dnn_w'].T + params['dnn_b'])
    h = h @ params['out_w'].T + params['out_b']
    return jax.nn.sigmoid(h)


def init_params(key, *, seq_len, in_channels=4, kernel_size=4,
                num_filters=32, dnn_size=128):
    """Deterministic synthetic parameters with the PyTorch module's shapes."""
    din = int(num_filters * (seq_len * 2) / kernel_size)
    ks = jax.random.split(key, 8)
    s = 0.1
    return {
        'conv_f_w': s * jax.random.normal(ks[0], (num_filters, in_channels, kernel_size), jnp.float32),
        'conv_f_b': s * jax.random.normal(ks[1], (num_filters,), jnp.float32),
        'conv_b_w': s * jax.random.normal(ks[2], (num_filters, in_channels, kernel_size), jnp.float32),
        'conv_b_b': s * jax.random.normal(ks[3], (num_filters,), jnp.float32),
        'dnn_w':    s * jax.random.normal(ks[4], (dnn_size, din), jnp.float32),
        'dnn_b':    s * jax.random.normal(ks[5], (dnn_size,), jnp.float32),
        'out_w':    s * jax.random.normal(ks[6], (1, dnn_size), jnp.float32),
        'out_b':    s * jax.random.normal(ks[7], (1,), jnp.float32),
    }


if __name__ == "__main__":
    SEQ_LEN = 16
    BATCH = 2
    IN_CH = 4

    key = jax.random.PRNGKey(0)
    k_x, k_p = jax.random.split(key)

    # x: (2, B, C, L) — x[0] = forward strand, x[1] = backward strand.
    x = jax.random.normal(k_x, (2, BATCH, IN_CH, SEQ_LEN), jnp.float32)
    params = init_params(k_p, seq_len=SEQ_LEN, in_channels=IN_CH)

    out = cnn1d_classifier_forward(x, params, seq_len=SEQ_LEN, in_channels=IN_CH)
    out = jax.block_until_ready(out)

    ref = _reference_forward(x, params, seq_len=SEQ_LEN, in_channels=IN_CH)
    assert out.shape == (BATCH, 1)
    assert bool(jnp.all(jnp.isfinite(out)))
    # bf16 matmul path vs f32 reference: explicit tolerance on the probabilities.
    assert bool(jnp.allclose(out, ref, atol=2e-2)), (out, ref)
    print("KERNEL_OK")
</pallas_src>

<mosaic_0001>
module attributes {stable_mosaic.version = 11 : i64} {
  func.func @_cnn1d_kernel(%arg0: i32, %arg1: memref<2x5x32xbf16, #tpu.memory_space<vmem>>, %arg2: memref<2x32x256xbf16, #tpu.memory_space<vmem>>, %arg3: memref<1x64xf32, #tpu.memory_space<vmem>>, %arg4: memref<256x128xbf16, #tpu.memory_space<vmem>>, %arg5: memref<1x128xf32, #tpu.memory_space<vmem>>, %arg6: memref<1x128xf32, #tpu.memory_space<vmem>>, %arg7: memref<1x1xf32, #tpu.memory_space<vmem>>, %arg8: memref<2x1xf32, #tpu.memory_space<vmem>>) attributes {dimension_semantics = [#tpu.dimension_semantics<parallel>], iteration_bounds = array<i64: 1>, scalar_prefetch = 0 : i64, scratch_operands = 0 : i64, tpu.core_type = #tpu.core_type<tc>, window_params = [{transform_indices = @transform_0, window_bounds = array<i64: 2, 5, 32>}, {pipeline_mode = #tpu.pipeline_mode<synchronous>, transform_indices = @transform_1, window_bounds = array<i64: 2, 32, 256>}, {pipeline_mode = #tpu.pipeline_mode<synchronous>, transform_indices = @transform_2, window_bounds = array<i64: 1, 64>}, {pipeline_mode = #tpu.pipeline_mode<synchronous>, transform_indices = @transform_3, window_bounds = array<i64: 256, 128>}, {pipeline_mode = #tpu.pipeline_mode<synchronous>, transform_indices = @transform_4, window_bounds = array<i64: 1, 128>}, {pipeline_mode = #tpu.pipeline_mode<synchronous>, transform_indices = @transform_5, window_bounds = array<i64: 1, 128>}, {pipeline_mode = #tpu.pipeline_mode<synchronous>, transform_indices = @transform_6, window_bounds = array<i64: 1, 1>}, {transform_indices = @transform_7, window_bounds = array<i64: 2, 1>}]} {
    %c0 = arith.constant 0 : index
    %c0_0 = arith.constant 0 : index
    %c0_1 = arith.constant 0 : index
    %0 = vector.load %arg1[%c0, %c0_0, %c0_1] : memref<2x5x32xbf16, #tpu.memory_space<vmem>>, vector<2x5x32xbf16>
    %1 = vector.extract_strided_slice %0 {offsets = [0, 0, 0], sizes = [2, 4, 32], strides = [1, 1, 1]} : vector<2x5x32xbf16> to vector<2x4x32xbf16>
    %2 = vector.shape_cast %1 : vector<2x4x32xbf16> to vector<8x32xbf16>
    %3 = vector.extract_strided_slice %0 {offsets = [0, 1, 0], sizes = [2, 4, 32], strides = [1, 1, 1]} : vector<2x5x32xbf16> to vector<2x4x32xbf16>
    %4 = vector.shape_cast %3 : vector<2x4x32xbf16> to vector<8x32xbf16>
    %c0_2 = arith.constant 0 : index
    %c0_3 = arith.constant 0 : index
    %c0_4 = arith.constant 0 : index
    %5 = vector.load %arg2[%c0_2, %c0_3, %c0_4] : memref<2x32x256xbf16, #tpu.memory_space<vmem>>, vector<1x32x256xbf16>
    %6 = vector.shape_cast %5 : vector<1x32x256xbf16> to vector<32x256xbf16>
    %cst = arith.constant dense<0.000000e+00> : vector<8x256xf32>
    %7 = tpu.matmul %2, %6, %cst {dimension_numbers = #tpu.dot_dimension_numbers<[1], [0], [0], [1], [0, 0, 1, 1], [], []>} : vector<8x32xbf16>, vector<32x256xbf16>, vector<8x256xf32> -> vector<8x256xf32>
    %c1 = arith.constant 1 : index
    %c0_5 = arith.constant 0 : index
    %c0_6 = arith.constant 0 : index
    %8 = vector.load %arg2[%c1, %c0_5, %c0_6] : memref<2x32x256xbf16, #tpu.memory_space<vmem>>, vector<1x32x256xbf16>
    %9 = vector.shape_cast %8 : vector<1x32x256xbf16> to vector<32x256xbf16>
    %cst_7 = arith.constant dense<0.000000e+00> : vector<8x256xf32>
    %10 = tpu.matmul %4, %9, %cst_7 {dimension_numbers = #tpu.dot_dimension_numbers<[1], [0], [0], [1], [0, 0, 1, 1], [], []>} : vector<8x32xbf16>, vector<32x256xbf16>, vector<8x256xf32> -> vector<8x256xf32>
    %11 = arith.addf %7, %10 : vector<8x256xf32>
    %12 = vector.extract_strided_slice %11 {offsets = [0, 0], sizes = [8, 64], strides = [1, 1]} : vector<8x256xf32> to vector<8x64xf32>
    %13 = vector.extract_strided_slice %11 {offsets = [0, 64], sizes = [8, 64], strides = [1, 1]} : vector<8x256xf32> to vector<8x64xf32>
    %14 = arith.maximumf %12, %13 : vector<8x64xf32>
    %15 = vector.extract_strided_slice %11 {offsets = [0, 128], sizes = [8, 64], strides = [1, 1]} : vector<8x256xf32> to vector<8x64xf32>
    %16 = arith.maximumf %14, %15 : vector<8x64xf32>
    %17 = vector.extract_strided_slice %11 {offsets = [0, 192], sizes = [8, 64], strides = [1, 1]} : vector<8x256xf32> to vector<8x64xf32>
    %18 = arith.maximumf %16, %17 : vector<8x64xf32>
    %c0_8 = arith.constant 0 : index
    %c0_9 = arith.constant 0 : index
    %19 = vector.load %arg3[%c0_8, %c0_9] : memref<1x64xf32, #tpu.memory_space<vmem>>, vector<1x64xf32>
    %20 = vector.broadcast %19 : vector<1x64xf32> to vector<8x64xf32>
    %21 = arith.addf %18, %20 : vector<8x64xf32>
    %cst_10 = arith.constant 0.000000e+00 : f32
    %22 = vector.broadcast %cst_10 : f32 to vector<8x64xf32>
    %23 = arith.maximumf %21, %22 : vector<8x64xf32>
    %24 = vector.shape_cast %23 : vector<8x64xf32> to vector<2x4x64xf32>
    %25 = vector.extract_strided_slice %24 {offsets = [0, 0, 0], sizes = [2, 1, 64], strides = [1, 1, 1]} : vector<2x4x64xf32> to vector<2x1x64xf32>
    %26 = vector.shape_cast %25 : vector<2x1x64xf32> to vector<2x64xf32>
    %27 = vector.extract_strided_slice %24 {offsets = [0, 1, 0], sizes = [2, 1, 64], strides = [1, 1, 1]} : vector<2x4x64xf32> to vector<2x1x64xf32>
    %28 = vector.shape_cast %27 : vector<2x1x64xf32> to vector<2x64xf32>
    %29 = vector.extract_strided_slice %24 {offsets = [0, 2, 0], sizes = [2, 1, 64], strides = [1, 1, 1]} : vector<2x4x64xf32> to vector<2x1x64xf32>
    %30 = vector.shape_cast %29 : vector<2x1x64xf32> to vector<2x64xf32>
    %31 = vector.extract_strided_slice %24 {offsets = [0, 3, 0], sizes = [2, 1, 64], strides = [1, 1, 1]} : vector<2x4x64xf32> to vector<2x1x64xf32>
    %32 = vector.shape_cast %31 : vector<2x1x64xf32> to vector<2x64xf32>
    %33 = tpu.concatenate %26, %28, %30, %32 in 1 : vector<2x64xf32>, vector<2x64xf32>, vector<2x64xf32>, vector<2x64xf32> -> vector<2x256xf32>
    %34 = arith.truncf %33 : vector<2x256xf32> to vector<2x256xbf16>
    %c0_11 = arith.constant 0 : index
    %c0_12 = arith.constant 0 : index
    %35 = vector.load %arg4[%c0_11, %c0_12] : memref<256x128xbf16, #tpu.memory_space<vmem>>, vector<256x128xbf16>
    %cst_13 = arith.constant dense<0.000000e+00> : vector<2x128xf32>
    %36 = tpu.matmul %34, %35, %cst_13 {dimension_numbers = #tpu.dot_dimension_numbers<[1], [0], [0], [1], [0, 0, 1, 1], [], []>} : vector<2x256xbf16>, vector<256x128xbf16>, vector<2x128xf32> -> vector<2x128xf32>
    %c0_14 = arith.constant 0 : index
    %c0_15 = arith.constant 0 : index
    %37 = vector.load %arg5[%c0_14, %c0_15] : memref<1x128xf32, #tpu.memory_space<vmem>>, vector<1x128xf32>
    %38 = vector.broadcast %37 : vector<1x128xf32> to vector<2x128xf32>
    %39 = arith.addf %36, %38 : vector<2x128xf32>
    %cst_16 = arith.constant 0.000000e+00 : f32
    %40 = vector.broadcast %cst_16 : f32 to vector<2x128xf32>
    %41 = arith.maximumf %39, %40 : vector<2x128xf32>
    %c0_17 = arith.constant 0 : index
    %c0_18 = arith.constant 0 : index
    %42 = vector.load %arg6[%c0_17, %c0_18] : memref<1x128xf32, #tpu.memory_space<vmem>>, vector<1x128xf32>
    %43 = vector.broadcast %42 : vector<1x128xf32> to vector<2x128xf32>
    %44 = arith.mulf %41, %43 : vector<2x128xf32>
    %cst_19 = arith.constant dense<0.000000e+00> : vector<2xf32>
    %45 = vector.multi_reduction <add>, %44, %cst_19 [1] : vector<2x128xf32> to vector<2xf32>
    %46 = vector.shape_cast %45 : vector<2xf32> to vector<2x1xf32>
    %c0_20 = arith.constant 0 : index
    %c0_21 = arith.constant 0 : index
    %47 = vector.load %arg7[%c0_20, %c0_21] : memref<1x1xf32, #tpu.memory_space<vmem>>, vector<1x1xf32>
    %48 = vector.broadcast %47 : vector<1x1xf32> to vector<2x1xf32>
    %49 = arith.addf %46, %48 : vector<2x1xf32>
    %50 = arith.negf %49 : vector<2x1xf32>
    %51 = math.exp %50 : vector<2x1xf32>
    %cst_22 = arith.constant 1.000000e+00 : f32
    %52 = vector.broadcast %cst_22 : f32 to vector<2x1xf32>
    %53 = arith.addf %52, %51 : vector<2x1xf32>
    %54 = arith.divf %52, %53 : vector<2x1xf32>
    %c0_23 = arith.constant 0 : index
    %c0_24 = arith.constant 0 : index
    %55 = vector.load %arg8[%c0_23, %c0_24] : memref<2x1xf32, #tpu.memory_space<vmem>>, vector<2x1xf32>
    tpu.vector_store %arg8[%c0_23, %c0_24], %54 {strides = array<i32>} : memref<2x1xf32, #tpu.memory_space<vmem>>, vector<2x1xf32>,
    return
  }
  func.func @transform_0(%arg0: i32) -> (i32, i32, i32) {
    %c0_i32 = arith.constant 0 : i32
    %c0_i32_0 = arith.constant 0 : i32
    %c0_i32_1 = arith.constant 0 : i32
    return %arg0, %c0_i32, %c0_i32_0 : i32, i32, i32
  }
  func.func @transform_1(%arg0: i32) -> (i32, i32, i32) {
    %c0_i32 = arith.constant 0 : i32
    %c0_i32_0 = arith.constant 0 : i32
    %c0_i32_1 = arith.constant 0 : i32
    %c0_i32_2 = arith.constant 0 : i32
    return %c0_i32, %c0_i32_0, %c0_i32_1 : i32, i32, i32
  }
  func.func @transform_2(%arg0: i32) -> (i32, i32) {
    %c0_i32 = arith.constant 0 : i32
    %c0_i32_0 = arith.constant 0 : i32
    %c0_i32_1 = arith.constant 0 : i32
    return %c0_i32, %c0_i32_0 : i32, i32
  }
  func.func @transform_3(%arg0: i32) -> (i32, i32) {
    %c0_i32 = arith.constant 0 : i32
    %c0_i32_0 = arith.constant 0 : i32
    %c0_i32_1 = arith.constant 0 : i32
    return %c0_i32, %c0_i32_0 : i32, i32
  }
  func.func @transform_4(%arg0: i32) -> (i32, i32) {
    %c0_i32 = arith.constant 0 : i32
    %c0_i32_0 = arith.constant 0 : i32
    %c0_i32_1 = arith.constant 0 : i32
    return %c0_i32, %c0_i32_0 : i32, i32
  }
  func.func @transform_5(%arg0: i32) -> (i32, i32) {
    %c0_i32 = arith.constant 0 : i32
    %c0_i32_0 = arith.constant 0 : i32
    %c0_i32_1 = arith.constant 0 : i32
    return %c0_i32, %c0_i32_0 : i32, i32
  }
  func.func @transform_6(%arg0: i32) -> (i32, i32) {
    %c0_i32 = arith.constant 0 : i32
    %c0_i32_0 = arith.constant 0 : i32
    %c0_i32_1 = arith.constant 0 : i32
    return %c0_i32, %c0_i32_0 : i32, i32
  }
  func.func @transform_7(%arg0: i32) -> (i32, i32) {
    %c0_i32 = arith.constant 0 : i32
    %c0_i32_0 = arith.constant 0 : i32
    return %arg0, %c0_i32 : i32, i32
  }
}

</mosaic_0001>

<llo_original>
// kernel: tpu_custom_call.1
$region0: #{tpu_custom_call.1}
  #allocation0 [shape = 'u32[]', space=smem, size = 0x4, offset = 0x4, fixed_abs, tag = 'smem constant byte address 0x4 - core index']
  #allocation1 [shape = 'u32[144,128]{1,0:T(1,128)}', space=vmem, size = 0x12000, scoped, tag = 'internal scratch']
  #allocation2 [shape = 'f32[1,1]{1,0:T(1,128)S(1)}', space=vmem, size = 0x200, scoped, tag = 'scoped memory for tpu_custom_call.1']
  %s0 = inlined_call_operand.vmem [shape: bf16[2,5,32], index: 0, kind: input, shape index: {}]
  %s1 = inlined_call_operand.hbm [shape: bf16[2,32,256], index: 1, kind: input, shape index: {}]
  %s2 = inlined_call_operand.vmem [shape: f32[1,64], index: 2, kind: input, shape index: {}]
  %s3 = inlined_call_operand.hbm [shape: bf16[256,128], index: 3, kind: input, shape index: {}]
  %s4 = inlined_call_operand.vmem [shape: f32[1,128], index: 4, kind: input, shape index: {}]
  %s5 = inlined_call_operand.vmem [shape: f32[1,128], index: 5, kind: input, shape index: {}]
  %s6 = inlined_call_operand.<no memory space> [shape: f32[1,1], index: 6, kind: input, shape index: {}]
  %s7 = inlined_call_operand.vmem [shape: f32[2,1], index: 7, kind: output, shape index: {}]
  %s8 = sld [smem:[#allocation0]]
  $region46: #{tpu_custom_call.1} parent=0
    _
  %s10 = ssub.s32 1, %s8
  %s11 = scalar_select 0, %s10, %s8
  %v12 = vstv %s6
  %13 = vst [vmem:[#allocation2] sm:$0x1] %v12
  $region1: #{tpu_custom_call.1} parent=0
    #allocation3 [shape = 'u8[32768]{0}', space=vmem, size = 0x8000, scoped, tag = 'input window, operand 1, single buffered']
    #allocation4 [shape = 's32[1]{0}', space=sflag, size = 0x4, scoped, tag = 'scoped memory for tpu_custom_call.1']
    #allocation5 [shape = 'u8[65536]{0}', space=vmem, size = 0x10000, scoped, tag = 'input window, operand 3, single buffered']
    #allocation6 [shape = 's32[1]{0}', space=sflag, size = 0x4, scoped, tag = 'scoped memory for tpu_custom_call.1']
    %14 = vsyncpa [#allocation4], 0
    %15 = vsyncpa [#allocation6], 0
    // Predicated region
    $region2: #{tpu_custom_call.1} parent=1 // pred_check
      _
    $region3: #{tpu_custom_call.1} parent=1 // pred_check_branch
      %17 = sbr.rel (0) target = $region5
    $region4: #{tpu_custom_call.1} parent=1 // pred_region
      _
    $region5: #{tpu_custom_call.1} parent=1 // pred_fallthru
      _
    // Predicated region
    $region6: #{tpu_custom_call.1} parent=1 // pred_check
      _
    $region7: #{tpu_custom_call.1} parent=1 // pred_check_branch
      %19 = sbr.rel (0) target = $region9
    $region8: #{tpu_custom_call.1} parent=1 // pred_region
      %s21 = ssub.s32 1024, 1024
      %22 = vsyncadd [#allocation4], %s21
      %s23 = sshll.u32 [#allocation3], 4
      %s24 = int_to_ptr.vmem [resolvable:$true] %s23
      %29 = dma.hbm_to_vmem [thread:$0]  %s1, 1024, %s24, [#allocation4], 128, 128, 8
    $region9: #{tpu_custom_call.1} parent=1 // pred_fallthru
      _
    // Predicated region
    $region10: #{tpu_custom_call.1} parent=1 // pred_check
      _
    $region11: #{tpu_custom_call.1} parent=1 // pred_check_branch
      %31 = sbr.rel (0) target = $region13
    $region12: #{tpu_custom_call.1} parent=1 // pred_region
      _
    $region13: #{tpu_custom_call.1} parent=1 // pred_fallthru
      _
    // Predicated region
    $region14: #{tpu_custom_call.1} parent=1 // pred_check
      _
    $region15: #{tpu_custom_call.1} parent=1 // pred_check_branch
      %33 = sbr.rel (0) target = $region17
    $region16: #{tpu_custom_call.1} parent=1 // pred_region
      %s35 = ssub.s32 2048, 2048
      %36 = vsyncadd [#allocation6], %s35
      %s37 = sshll.u32 [#allocation5], 4
      %s38 = int_to_ptr.vmem [resolvable:$true] %s37
      %43 = dma.hbm_to_vmem [thread:$0]  %s3, 2048, %s38, [#allocation6], 64, 64, 4
    $region17: #{tpu_custom_call.1} parent=1 // pred_fallthru
      _
    // Predicated region
    $region18: #{tpu_custom_call.1} parent=1 // pred_check
      _
    $region19: #{tpu_custom_call.1} parent=1 // pred_check_branch
      %45 = sbr.rel (0) target = $region21
    $region20: #{tpu_custom_call.1} parent=1 // pred_region
      _
    $region21: #{tpu_custom_call.1} parent=1 // pred_fallthru
      _
    // Predicated region
    $region22: #{tpu_custom_call.1} parent=1 // pred_check
      _
    $region23: #{tpu_custom_call.1} parent=1 // pred_check_branch
      %47 = sbr.rel (0) target = $region25
    $region24: #{tpu_custom_call.1} parent=1 // pred_region
      _
    $region25: #{tpu_custom_call.1} parent=1 // pred_fallthru
      _
    // Predicated region
    $region26: #{tpu_custom_call.1} parent=1 // pred_check
      _
    $region27: #{tpu_custom_call.1} parent=1 // pred_check_branch
      %49 = sbr.rel (0) target = $region29
    $region28: #{tpu_custom_call.1} parent=1 // pred_region
      _
    $region29: #{tpu_custom_call.1} parent=1 // pred_fallthru
      _
    // Predicated region
    $region30: #{tpu_custom_call.1} parent=1 // pred_check
      _
    $region31: #{tpu_custom_call.1} parent=1 // pred_check_branch
      %51 = sbr.rel (0) target = $region33
    $region32: #{tpu_custom_call.1} parent=1 // pred_region
      %52 = dma.done [#allocation4], 1024
    $region33: #{tpu_custom_call.1} parent=1 // pred_fallthru
      _
    // Predicated region
    $region34: #{tpu_custom_call.1} parent=1 // pred_check
      _
    $region35: #{tpu_custom_call.1} parent=1 // pred_check_branch
      %54 = sbr.rel (0) target = $region37
    $region36: #{tpu_custom_call.1} parent=1 // pred_region
      %55 = dma.done [#allocation6], 2048
    $region37: #{tpu_custom_call.1} parent=1 // pred_fallthru
      _
    %v57 = vld [vmem:[%s0] sm:$0x7]
    %v58 = vld [vmem:[%s0 + $0x4] sm:$0x7]
    %v62 = vunpack.c.l.s4 1983009808
    %v63 = vunpack.c.0.s8 %v62
    %v64 = vlaneseq
    %v65 = vshrl.u32 %v64, 7
    %v66 = vsub.s32 %v63, %v65
    %v67 = vrot.slane %v57, %v66
    %v68 = vcombine.high %v67, %v67
    %v70 = vunpack.c.l.s4 1983009808
    %v71 = vunpack.c.0.s8 %v70
    %v72 = vlaneseq
    %v73 = vshrl.u32 %v72, 7
    %v74 = vsub.s32 %v71, %v73
    %v75 = vrot.slane %v58, %v74
    %v76 = vcombine.high %v75, %v75
    %vm77 = vsmask.f32 1280
    %vm78 = vsmask.f32 3336
    %vm79 = vmor %vm77, %vm78
    %vm80 = vsmask.f32 5392
    %vm81 = vmor %vm79, %vm80
    %vm82 = vsmask.f32 7448
    %vm83 = vmor %vm81, %vm82
    %v85 = vshrl.u32 %v67, 16
    %v87 = vrot.slane %v85, 6
    %v88 = vshll.u32 %v67, 16
    %v90 = vrot.slane %v88, 7
    %v91 = vor.u32 %v87, %v90
    %v92 = vrot.slane %v91, 2
    %v94 = vshll.u32 %v68, 16
    %v96 = vrot.slane %v94, 7
    %v97 = vsel %vm83, %v92, %v96
    %v99 = vshrl.u32 %v75, 16
    %v101 = vrot.slane %v99, 6
    %v102 = vshll.u32 %v75, 16
    %v104 = vrot.slane %v102, 7
    %v105 = vor.u32 %v101, %v104
    %v106 = vrot.slane %v105, 2
    %v108 = vshll.u32 %v76, 16
    %v110 = vrot.slane %v108, 7
    %v111 = vsel %vm83, %v106, %v110
    %v112 = vld [vmem:[#allocation3] sm:$0xff]
    %v113 = vld [vmem:[#allocation3 + $0x8] sm:$0xff]
    %v114 = vld [vmem:[#allocation3 + $0x10] sm:$0xff]
    %v115 = vld [vmem:[#allocation3 + $0x18] sm:$0xff]
    %s116 = scalar_lea.vmem [#allocation3], 32
    %v117 = vld [vmem:[%s116] sm:$0xff]
    %v118 = vld [vmem:[%s116 + $0x8] sm:$0xff]
    %v119 = vld [vmem:[%s116 + $0x10] sm:$0xff]
    %v120 = vld [vmem:[%s116 + $0x18] sm:$0xff]
    %v121 = vcombine.low %v97, %v111
    %v123 = vunpack.c.l.s4 1983009808
    %v124 = vunpack.c.0.s8 %v123
    %v125 = vlaneseq
    %v126 = vshrl.u32 %v125, 7
    %v127 = vsub.s32 %v124, %v126
    %v128 = vrot.slane %v121, %v127
    %v133 = vunpack.c.l.b16 %v117
    %v134 = vunpack.c.h.b16 %v117
    %v135 = vunpack.c.l.b16 %v118
    %v136 = vunpack.c.h.b16 %v118
    %v137 = vunpack.c.l.b16 %v119
    %v138 = vunpack.c.h.b16 %v119
    %v139 = vunpack.c.l.b16 %v120
    %v140 = vunpack.c.h.b16 %v120
    %v141 = vpack.c.b16 %v135, %v133
    %v142 = vpack.c.b16 %v136, %v134
    %v143 = vpack.c.b16 %v139, %v137
    %v144 = vpack.c.b16 %v140, %v138
    %vm149 = vcmask 261120
    %v151 = vsel %vm149, %v128, 0
    %153 = vmatprep.subr.bf16.mxu0 %v142
    %154 = vmatpush1.bf16.msra.mxu0 %v141
    %155 = vmatprep.subr.bf16.mxu0 %v144
    %156 = vmatpush1.bf16.msra.mxu0 %v143
    %157 = vmatprep.subr.bf16.mxu0 0
    %158 = vmatpush1.bf16.msra.mxu0 0
    %159 = vmatprep.subr.bf16.mxu0 0
    %160 = vmatpush1.bf16.msra.mxu0 0
    %161 = vmatprep.subr.bf16.mxu0 0
    %162 = vmatpush1.bf16.msra.mxu0 0
    %163 = vmatprep.subr.bf16.mxu0 0
    %164 = vmatpush1.bf16.msra.mxu0 0
    %165 = vmatprep.subr.bf16.mxu0 0
    %166 = vmatpush1.bf16.msra.mxu0 0
    %167 = vmatprep.subr.bf16.mxu0 0
    %168 = vmatpush1.bf16.msra.mxu0 0
    %169 = vmatprep.subr.bf16.mxu0 0
    %170 = vmatpush1.bf16.msra.mxu0 0
    %171 = vmatprep.subr.bf16.mxu0 0
    %172 = vmatpush1.bf16.msra.mxu0 0
    %173 = vmatprep.subr.bf16.mxu0 0
    %174 = vmatpush1.bf16.msra.mxu0 0
    %175 = vmatprep.subr.bf16.mxu0 0
    %176 = vmatpush1.bf16.msra.mxu0 0
    %177 = vmatprep.subr.bf16.mxu0 0
    %178 = vmatpush1.bf16.msra.mxu0 0
    %179 = vmatprep.subr.bf16.mxu0 0
    %180 = vmatpush1.bf16.msra.mxu0 0
    %181 = vmatprep.subr.bf16.mxu0 0
    %182 = vmatpush1.bf16.msra.mxu0 0
    %183 = vmatprep.subr.bf16.mxu0 0
    %184 = vmatpush1.bf16.msra.mxu0 0
    %185 = vmatprep.mubr.bf16.mxu0 0
    %186 = vmatmul.mubr.bf16.gmra.mrb[0].mxu0 %v151
    %v187 = vpop.f32.mrb[0].mxu0
    %v188 = vadd.f32 0.0, %v187
    %v189 = vpop.f32.mrb[0].mxu0
    %v190 = vadd.f32 0.0, %v189
    %v191 = vpop.f32.mrb[0].mxu0
    %v192 = vpop.f32.mrb[0].mxu0
    %193 = vdwg.mxu0
    %v194 = vcombine.low %v57, %v58
    %v196 = vunpack.c.l.s4 1983009808
    %v197 = vunpack.c.0.s8 %v196
    %v198 = vlaneseq
    %v199 = vshrl.u32 %v198, 7
    %v200 = vsub.s32 %v197, %v199
    %v201 = vrot.slane %v194, %v200
    %v206 = vunpack.c.l.b16 %v112
    %v207 = vunpack.c.h.b16 %v112
    %v208 = vunpack.c.l.b16 %v113
    %v209 = vunpack.c.h.b16 %v113
    %v210 = vunpack.c.l.b16 %v114
    %v211 = vunpack.c.h.b16 %v114
    %v212 = vunpack.c.l.b16 %v115
    %v213 = vunpack.c.h.b16 %v115
    %v214 = vpack.c.b16 %v208, %v206
    %v215 = vpack.c.b16 %v209, %v207
    %v216 = vpack.c.b16 %v212, %v210
    %v217 = vpack.c.b16 %v213, %v211
    %v223 = vsel %vm149, %v201, 0
    %225 = vmatprep.subr.bf16.mxu0 %v215
    %226 = vmatpush1.bf16.msra.mxu0 %v214
    %227 = vmatprep.subr.bf16.mxu0 %v217
    %228 = vmatpush1.bf16.msra.mxu0 %v216
    %229 = vmatprep.subr.bf16.mxu0 0
    %230 = vmatpush1.bf16.msra.mxu0 0
    %231 = vmatprep.subr.bf16.mxu0 0
    %232 = vmatpush1.bf16.msra.mxu0 0
    %233 = vmatprep.subr.bf16.mxu0 0
    %234 = vmatpush1.bf16.msra.mxu0 0
    %235 = vmatprep.subr.bf16.mxu0 0
    %236 = vmatpush1.bf16.msra.mxu0 0
    %237 = vmatprep.subr.bf16.mxu0 0
    %238 = vmatpush1.bf16.msra.mxu0 0
    %239 = vmatprep.subr.bf16.mxu0 0
    %240 = vmatpush1.bf16.msra.mxu0 0
    %241 = vmatprep.subr.bf16.mxu0 0
    %242 = vmatpush1.bf16.msra.mxu0 0
    %243 = vmatprep.subr.bf16.mxu0 0
    %244 = vmatpush1.bf16.msra.mxu0 0
    %245 = vmatprep.subr.bf16.mxu0 0
    %246 = vmatpush1.bf16.msra.mxu0 0
    %247 = vmatprep.subr.bf16.mxu0 0
    %248 = vmatpush1.bf16.msra.mxu0 0
    %249 = vmatprep.subr.bf16.mxu0 0
    %250 = vmatpush1.bf16.msra.mxu0 0
    %251 = vmatprep.subr.bf16.mxu0 0
    %252 = vmatpush1.bf16.msra.mxu0 0
    %253 = vmatprep.subr.bf16.mxu0 0
    %254 = vmatpush1.bf16.msra.mxu0 0
    %255 = vmatprep.subr.bf16.mxu0 0
    %256 = vmatpush1.bf16.msra.mxu0 0
    %257 = vmatprep.mubr.bf16.mxu0 0
    %258 = vmatmul.mubr.bf16.gmra.mrb[0].mxu0 %v223
    %v259 = vpop.f32.mrb[0].mxu0
    %v260 = vadd.f32 %v188, %v259
    %v261 = vpop.f32.mrb[0].mxu0
    %v262 = vadd.f32 %v190, %v261
    %v263 = vpop.f32.mrb[0].mxu0
    %v264 = vpop.f32.mrb[0].mxu0
    %265 = vdwg.mxu0
    %267 = vrot.lane.b32.xlu0 %v260, 64
    %v268 = vpop.permute.xlu0 %267
    %v270 = vmax.f32 %v260, %v268
    %v271 = vmax.f32 %v270, %v262
    %273 = vrot.lane.b32.xlu0 %v262, 64
    %v274 = vpop.permute.xlu0 %273
    %v276 = vmax.f32 %v271, %v274
    %v277 = vld [vmem:[%s2] sm:$0x1]
    %v279 = vlaneseq
    %v280 = vshrl.u32 %v279, 7
    %v281 = vsub.s32 0, %v280
    %v282 = vrot.slane %v277, %v281
    %v284 = vadd.f32 %v276, %v282
    %v285 = vmax.f32 %v284, 0.0
    %v287 = vcombine.high %v285, %v285
    %v288 = vlaneseq
    %v289 = vshrl.u32 %v288, 7
    %v290 = vsub.s32 0, %v289
    %v291 = vrot.slane %v285, %v290
    %v292 = vlaneseq
    %v293 = vshrl.u32 %v292, 7
    %v294 = vsub.s32 0, %v293
    %v295 = vrot.slane %v287, %v294
    %vm296 = vcmask 1041409
    %v297 = vsel %vm296, %v295, %v291
    %v299 = vlaneseq
    %v300 = vshrl.u32 %v299, 7
    %v301 = vsub.s32 1, %v300
    %v302 = vrot.slane %v285, %v301
    %v303 = vlaneseq
    %v304 = vshrl.u32 %v303, 7
    %v305 = vsub.s32 1, %v304
    %v306 = vrot.slane %v287, %v305
    %v307 = vsel %vm296, %v306, %v302
    %308 = vrot.lane.b32.xlu0 %v307, 64
    %v309 = vpop.permute.xlu0 %308
    %v311 = vlaneseq
    %v312 = vshrl.u32 %v311, 7
    %v313 = vsub.s32 2, %v312
    %v314 = vrot.slane %v285, %v313
    %v315 = vlaneseq
    %v316 = vshrl.u32 %v315, 7
    %v317 = vsub.s32 2, %v316
    %v318 = vrot.slane %v287, %v317
    %v319 = vsel %vm296, %v318, %v314
    %v321 = vlaneseq
    %v322 = vshrl.u32 %v321, 7
    %v323 = vsub.s32 3, %v322
    %v324 = vrot.slane %v285, %v323
    %v325 = vlaneseq
    %v326 = vshrl.u32 %v325, 7
    %v327 = vsub.s32 3, %v326
    %v328 = vrot.slane %v287, %v327
    %v329 = vsel %vm296, %v328, %v324
    %330 = vrot.lane.b32.xlu0 %v329, 64
    %v331 = vpop.permute.xlu0 %330
    %vm333 = vcmask 523264
    %v334 = vsel %vm333, %v297, %v309
    %v335 = vsel %vm333, %v319, %v331
    %v336 = vpack.c.bf16 %v334, %v334
    %v337 = vpack.c.bf16 %v335, %v335
    %v338 = vld [vmem:[#allocation5] sm:$0xf]
    %v339 = vld [vmem:[#allocation5 + $0x4] sm:$0xf]
    %v340 = vld [vmem:[#allocation5 + $0x8] sm:$0xf]
    %v341 = vld [vmem:[#allocation5 + $0xc] sm:$0xf]
    %v342 = vld [vmem:[#allocation5 + $0x10] sm:$0xf]
    %v343 = vld [vmem:[#allocation5 + $0x14] sm:$0xf]
    %v344 = vld [vmem:[#allocation5 + $0x18] sm:$0xf]
    %v345 = vld [vmem:[#allocation5 + $0x1c] sm:$0xf]
    %v346 = vld [vmem:[#allocation5 + $0x20] sm:$0xf]
    %v347 = vld [vmem:[#allocation5 + $0x24] sm:$0xf]
    %v348 = vld [vmem:[#allocation5 + $0x28] sm:$0xf]
    %v349 = vld [vmem:[#allocation5 + $0x2c] sm:$0xf]
    %v350 = vld [vmem:[#allocation5 + $0x30] sm:$0xf]
    %v351 = vld [vmem:[#allocation5 + $0x34] sm:$0xf]
    %v352 = vld [vmem:[#allocation5 + $0x38] sm:$0xf]
    %v353 = vld [vmem:[#allocation5 + $0x3c] sm:$0xf]
    %v354 = vld [vmem:[#allocation5 + $0x40] sm:$0xf]
    %v355 = vld [vmem:[#allocation5 + $0x44] sm:$0xf]
    %v356 = vld [vmem:[#allocation5 + $0x48] sm:$0xf]
    %v357 = vld [vmem:[#allocation5 + $0x4c] sm:$0xf]
    %v358 = vld [vmem:[#allocation5 + $0x50] sm:$0xf]
    %v359 = vld [vmem:[#allocation5 + $0x54] sm:$0xf]
    %v360 = vld [vmem:[#allocation5 + $0x58] sm:$0xf]
    %v361 = vld [vmem:[#allocation5 + $0x5c] sm:$0xf]
    %v362 = vld [vmem:[#allocation5 + $0x60] sm:$0xf]
    %v363 = vld [vmem:[#allocation5 + $0x64] sm:$0xf]
    %v364 = vld [vmem:[#allocation5 + $0x68] sm:$0xf]
    %v365 = vld [vmem:[#allocation5 + $0x6c] sm:$0xf]
    %v366 = vld [vmem:[#allocation5 + $0x70] sm:$0xf]
    %v367 = vld [vmem:[#allocation5 + $0x74] sm:$0xf]
    %v368 = vld [vmem:[#allocation5 + $0x78] sm:$0xf]
    %v369 = vld [vmem:[#allocation5 + $0x7c] sm:$0xf]
    %v370 = vld [vmem:[%s4] sm:$0x1]
    %v372 = vlaneseq
    %v373 = vshrl.u32 %v372, 7
    %v374 = vsub.s32 0, %v373
    %v375 = vrot.slane %v370, %v374
    %v409 = vunpack.c.l.b16 %v338
    %v410 = vunpack.c.l.b16 %v339
    %v411 = vunpack.c.l.b16 %v340
    %v412 = vunpack.c.l.b16 %v341
    %v413 = vunpack.c.l.b16 %v342
    %v414 = vunpack.c.l.b16 %v343
    %v415 = vunpack.c.l.b16 %v344
    %v416 = vunpack.c.l.b16 %v345
    %v417 = vunpack.c.l.b16 %v346
    %v418 = vunpack.c.l.b16 %v347
    %v419 = vunpack.c.l.b16 %v348
    %v420 = vunpack.c.l.b16 %v349
    %v421 = vunpack.c.l.b16 %v350
    %v422 = vunpack.c.l.b16 %v351
    %v423 = vunpack.c.l.b16 %v352
    %v424 = vunpack.c.l.b16 %v353
    %v425 = vunpack.c.l.b16 %v354
    %v426 = vunpack.c.l.b16 %v355
    %v427 = vunpack.c.l.b16 %v356
    %v428 = vunpack.c.l.b16 %v357
    %v429 = vunpack.c.l.b16 %v358
    %v430 = vunpack.c.l.b16 %v359
    %v431 = vunpack.c.l.b16 %v360
    %v432 = vunpack.c.l.b16 %v361
    %v433 = vunpack.c.l.b16 %v362
    %v434 = vunpack.c.l.b16 %v363
    %v435 = vunpack.c.l.b16 %v364
    %v436 = vunpack.c.l.b16 %v365
    %v437 = vunpack.c.l.b16 %v366
    %v438 = vunpack.c.l.b16 %v367
    %v439 = vunpack.c.l.b16 %v368
    %v440 = vunpack.c.l.b16 %v369
    %v441 = vpack.c.b16 %v410, %v409
    %v442 = vpack.c.b16 %v412, %v411
    %v443 = vpack.c.b16 %v414, %v413
    %v444 = vpack.c.b16 %v416, %v415
    %v445 = vpack.c.b16 %v418, %v417
    %v446 = vpack.c.b16 %v420, %v419
    %v447 = vpack.c.b16 %v422, %v421
    %v448 = vpack.c.b16 %v424, %v423
    %v449 = vpack.c.b16 %v426, %v425
    %v450 = vpack.c.b16 %v428, %v427
    %v451 = vpack.c.b16 %v430, %v429
    %v452 = vpack.c.b16 %v432, %v431
    %v453 = vpack.c.b16 %v434, %v433
    %v454 = vpack.c.b16 %v436, %v435
    %v455 = vpack.c.b16 %v438, %v437
    %v456 = vpack.c.b16 %v440, %v439
    %473 = vmatprep.subr.bf16.mxu0 0
    %474 = vmatpush1.bf16.msra.mxu0 %v441
    %475 = vmatprep.subr.bf16.mxu0 0
    %476 = vmatpush1.bf16.msra.mxu0 %v442
    %477 = vmatprep.subr.bf16.mxu0 0
    %478 = vmatpush1.bf16.msra.mxu0 %v443
    %479 = vmatprep.subr.bf16.mxu0 0
    %480 = vmatpush1.bf16.msra.mxu0 %v444
    %481 = vmatprep.subr.bf16.mxu0 0
    %482 = vmatpush1.bf16.msra.mxu0 %v445
    %483 = vmatprep.subr.bf16.mxu0 0
    %484 = vmatpush1.bf16.msra.mxu0 %v446
    %485 = vmatprep.subr.bf16.mxu0 0
    %486 = vmatpush1.bf16.msra.mxu0 %v447
    %487 = vmatprep.subr.bf16.mxu0 0
    %488 = vmatpush1.bf16.msra.mxu0 %v448
    %489 = vmatprep.subr.bf16.mxu0 0
    %490 = vmatpush1.bf16.msra.mxu0 %v449
    %491 = vmatprep.subr.bf16.mxu0 0
    %492 = vmatpush1.bf16.msra.mxu0 %v450
    %493 = vmatprep.subr.bf16.mxu0 0
    %494 = vmatpush1.bf16.msra.mxu0 %v451
    %495 = vmatprep.subr.bf16.mxu0 0
    %496 = vmatpush1.bf16.msra.mxu0 %v452
    %497 = vmatprep.subr.bf16.mxu0 0
    %498 = vmatpush1.bf16.msra.mxu0 %v453
    %499 = vmatprep.subr.bf16.mxu0 0
    %500 = vmatpush1.bf16.msra.mxu0 %v454
    %501 = vmatprep.subr.bf16.mxu0 0
    %502 = vmatpush1.bf16.msra.mxu0 %v455
    %503 = vmatprep.subr.bf16.mxu0 0
    %504 = vmatpush1.bf16.msra.mxu0 %v456
    %505 = vmatprep.mubr.bf16.mxu0 %v337
    %506 = vmatmul.mubr.bf16.gmra.mrb[0].mxu0 %v336
    %v507 = vpop.f32.mrb[0].mxu0
    %v508 = vadd.f32 %v375, %v507
    %v509 = vpop.f32.mrb[0].mxu0
    %v510 = vpop.f32.mrb[0].mxu0
    %v511 = vpop.f32.mrb[0].mxu0
    %512 = vdwg.mxu0
    %v513 = vmax.f32 %v508, 0.0
    %v514 = vld [vmem:[%s5] sm:$0x1]
    %v516 = vlaneseq
    %v517 = vshrl.u32 %v516, 7
    %v518 = vsub.s32 0, %v517
    %v519 = vrot.slane %v514, %v518
    %v521 = vmul.f32 %v513, %v519
    %vm522 = vcmask 1041408
    %v523 = vsel %vm522, %v521, 0.0
    %524 = vadd.xlane.f32.xlu0 %v523
    %v525 = vpop.xlane.xlu0 %524
    %v526 = vld [vmem:[#allocation2] sm:$0x1]
    %v528 = vlaneseq
    %v529 = vshrl.u32 %v528, 7
    %v530 = vsub.s32 0, %v529
    %v531 = vrot.slane %v526, %v530
    %v533 = vadd.f32 %v525, %v531
    %v534 = vxor.u32 %v533, 2147483648
    %v535 = vmul.f32 %v534, 1.442695
    %v536 = vpow.pop %v535
    %v537 = vadd.f32 %v536, 1.0
    %v538 = vrcp.pop %v537
    %v539 = vmul.f32 1.0, %v538
    %vm540 = vcmask 1024
    %541 = vst.msk [vmem:[%s7] sm:$0x3] %vm540, %v539
    // Predicated region
    $region38: #{tpu_custom_call.1} parent=1 // pred_check
      _
    $region39: #{tpu_custom_call.1} parent=1 // pred_check_branch
      %543 = sbr.rel (0) target = $region41
    $region40: #{tpu_custom_call.1} parent=1 // pred_region
      _
    $region41: #{tpu_custom_call.1} parent=1 // pred_fallthru
      _
    // Predicated region
    $region42: #{tpu_custom_call.1} parent=1 // pred_check
      _
    $region43: #{tpu_custom_call.1} parent=1 // pred_check_branch
      %545 = sbr.rel (0) target = $region45
    $region44: #{tpu_custom_call.1} parent=1 // pred_region
      _
    $region45: #{tpu_custom_call.1} parent=1 // pred_fallthru
      _
    %546 = vsyncpa [#allocation4], 1
    %547 = vsyncpa [#allocation6], 1

</llo_original>
